<compile_context>
chip_gen: v5e
topology: v5e:2x2
jax: 0.10.0
libtpu: 0.0.40
codegen_flags: <defaults>
</compile_context>

<pallas_src>
import numpy as np
import jax
import jax.numpy as jnp
from jax.experimental import pallas as pl
from jax.experimental.pallas import tpu as pltpu

embedding_dim = 20
hidden_size = 20
hidden_size2 = 20

_LANES = 128
_SUBLANES = 8


def _round_up(n, m):
    return ((n + m - 1) // m) * m


def pack_params(params):
    """Stack every f32 parameter into one lane-dense (R, 128) slab.

    Each piece starts at a sublane-aligned (multiple of 8) row offset so the
    static in-kernel slices never start on an unaligned (8,128) tile row.
    Returns (slab, layout) with layout[name] = (row_offset, rows, cols),
    all static Python ints.
    """
    order = ['emb', 'lstm_wih', 'lstm_whh', 'lstm_b',
             'cell_wih', 'cell_whh', 'cell_b',
             'lin_w1', 'lin_w2', 'lin_b', 'act_w', 'act_b']
    layout = {}
    blocks = []
    off = 0
    for name in order:
        arr = jnp.asarray(params[name], jnp.float32)
        r, c = arr.shape
        rp = _round_up(r, _SUBLANES)
        layout[name] = (off, r, c)
        blocks.append(jnp.pad(arr, ((0, rp - r), (0, _LANES - c))))
        off += rp
    return jnp.concatenate(blocks, axis=0), layout


def _make_kernel(T, V1, E, H, layout):
    def rd(ref, name):
        o, r, c = layout[name]
        return ref[o:o + r, 0:c]

    def kernel(ids_ref, slab_ref, state_ref, logits_ref, state_out_ref):
        # ---- embedding + padding mask as one-hot matmul on the MXU ----
        # Note: out-of-range ids (> num_symbols) give an all-zero row, i.e.
        # zero embedding, instead of an OOB gather.
        ids = ids_ref[...]                                         # (T, 1) i32
        vocab = jax.lax.broadcasted_iota(jnp.int32, (T, V1), 1)    # (T, V1)
        onehot = (ids == vocab).astype(jnp.float32)
        onehot = onehot * (ids != (V1 - 1)).astype(jnp.float32)    # fold mask
        xs = jnp.dot(onehot, rd(slab_ref, 'emb'),
                     preferred_element_type=jnp.float32)           # (T, E)

        # ---- hoisted input projection: all gates, all steps, one matmul ----
        xw = (jnp.dot(xs, rd(slab_ref, 'lstm_wih'),
                      preferred_element_type=jnp.float32)
              + rd(slab_ref, 'lstm_b'))                            # (T, 4H)

        lstm_whh = rd(slab_ref, 'lstm_whh')                        # (H, 4H)

        def gates(z, c):
            # z: (1, 4H) packed pre-activations, PyTorch gate order i|f|g|o.
            s = jax.nn.sigmoid(z)          # one EUP pass covers i, f, o
            t = jnp.tanh(z)                # one EUP pass covers g
            i = s[:, 0:H]
            f = s[:, H:2 * H]
            g = t[:, 2 * H:3 * H]
            o = s[:, 3 * H:4 * H]
            c_new = f * c + i * g
            h_new = o * jnp.tanh(c_new)
            return h_new, c_new

        # ---- fully unrolled recurrence; activations stay in vregs ----
        h = jnp.zeros((1, H), jnp.float32)
        c = jnp.zeros((1, H), jnp.float32)
        x4 = jnp.zeros((1, H), jnp.float32)
        for t in range(T):                                         # static T
            z = xw[t:t + 1, :] + jnp.dot(h, lstm_whh,
                                         preferred_element_type=jnp.float32)
            h, c = gates(z, c)
            x4 = x4 + h

        # ---- LSTMCell with persistent (hx, cx) state ----
        hx0 = state_ref[0:1, :]
        cx0 = state_ref[1:2, :]
        z_cell = (jnp.dot(x4, rd(slab_ref, 'cell_wih'),
                          preferred_element_type=jnp.float32)
                  + jnp.dot(hx0, rd(slab_ref, 'cell_whh'),
                            preferred_element_type=jnp.float32)
                  + rd(slab_ref, 'cell_b'))
        hx_new, cx_new = gates(z_cell, cx0)

        # ---- Linear(cat(x4, hx)) + ReLU ; Linear -> actions ----
        # concat folded into two half matmuls: cat(a,b) @ W == a@W1 + b@W2
        x5 = jnp.maximum(
            jnp.dot(x4, rd(slab_ref, 'lin_w1'),
                    preferred_element_type=jnp.float32)
            + jnp.dot(hx_new, rd(slab_ref, 'lin_w2'),
                      preferred_element_type=jnp.float32)
            + rd(slab_ref, 'lin_b'),
            0.0)
        logits_ref[...] = (jnp.dot(x5, rd(slab_ref, 'act_w'),
                                   preferred_element_type=jnp.float32)
                           + rd(slab_ref, 'act_b'))
        state_out_ref[...] = jnp.concatenate([hx_new, cx_new], axis=0)

    return kernel


def net_lstm_forward(slab, layout, x_ids, state, num_actions):
    B, T = x_ids.shape
    assert B == 1, "LSTMCell state in the reference module is (1, H) -> batch must be 1"
    _, V1, E = layout['emb'][0], layout['emb'][1], layout['emb'][2]
    H = hidden_size
    A = num_actions

    ids_col = x_ids.reshape(T, 1).astype(jnp.int32)
    kernel = _make_kernel(T, V1, E, H, layout)

    vmem = pl.BlockSpec(memory_space=pltpu.MemorySpace.VMEM)
    logits, state_new = pl.pallas_call(
        kernel,
        out_shape=(jax.ShapeDtypeStruct((1, A), jnp.float32),
                   jax.ShapeDtypeStruct((2, H), jnp.float32)),
        in_specs=[vmem, vmem, vmem],
        out_specs=(vmem, vmem),
        input_output_aliases={2: 1},     # persistent (hx, cx) updated in place
    )(ids_col, slab, state)
    return logits, state_new


def init_params(key, num_symbols, num_actions):
    E, H, H2 = embedding_dim, hidden_size, hidden_size2
    ks = jax.random.split(key, 14)

    def u(k, shape, fan_in):
        bound = 1.0 / np.sqrt(fan_in)
        return jax.random.uniform(k, shape, jnp.float32, -bound, bound)

    return {
        'emb': jax.random.normal(ks[0], (num_symbols + 1, E), jnp.float32),
        # gate order i|f|g|o along the 4H axis (PyTorch layout, pre-transposed)
        'lstm_wih': u(ks[1], (E, 4 * H), H),
        'lstm_whh': u(ks[2], (H, 4 * H), H),
        'lstm_b': u(ks[3], (1, 4 * H), H) + u(ks[4], (1, 4 * H), H),   # b_ih+b_hh
        'cell_wih': u(ks[5], (H, 4 * H), H),
        'cell_whh': u(ks[6], (H, 4 * H), H),
        'cell_b': u(ks[7], (1, 4 * H), H) + u(ks[8], (1, 4 * H), H),   # b_ih+b_hh
        'lin_w1': u(ks[9], (H, H2), 2 * H),
        'lin_w2': u(ks[10], (H, H2), 2 * H),
        'lin_b': u(ks[11], (1, H2), 2 * H),
        'act_w': u(ks[12], (H2, num_actions), H2),
        'act_b': u(ks[13], (1, num_actions), H2),
    }


def reference_forward(params, x_ids, hx, cx):
    """Pure-JAX reference reproducing the PyTorch forward semantics."""
    num_symbols = params['emb'].shape[0] - 1
    H = hidden_size
    x2 = params['emb'][x_ids]                                       # (B, T, E)
    mask = (x_ids != num_symbols).astype(jnp.float32)[..., None]    # (B, T, 1)
    x2 = x2 * mask

    def lstm_step(x_t, h, c, wih, whh, b):
        z = x_t @ wih + h @ whh + b
        i = jax.nn.sigmoid(z[:, 0:H])
        f = jax.nn.sigmoid(z[:, H:2 * H])
        g = jnp.tanh(z[:, 2 * H:3 * H])
        o = jax.nn.sigmoid(z[:, 3 * H:4 * H])
        c_new = f * c + i * g
        return o * jnp.tanh(c_new), c_new

    B, T, _ = x2.shape
    h = jnp.zeros((B, H), jnp.float32)
    c = jnp.zeros((B, H), jnp.float32)
    x4 = jnp.zeros((B, H), jnp.float32)
    for t in range(T):
        h, c = lstm_step(x2[:, t, :], h, c,
                         params['lstm_wih'], params['lstm_whh'], params['lstm_b'])
        x4 = x4 + h
    hx_new, cx_new = lstm_step(x4, hx, cx,
                               params['cell_wih'], params['cell_whh'], params['cell_b'])
    x5 = jax.nn.relu(x4 @ params['lin_w1'] + hx_new @ params['lin_w2'] + params['lin_b'])
    logits = x5 @ params['act_w'] + params['act_b']
    return logits, hx_new, cx_new


if __name__ == "__main__":
    num_symbols = 10
    num_actions = 4
    B, T = 1, 8

    key = jax.random.PRNGKey(0)
    pkey, xkey = jax.random.split(key)
    params = init_params(pkey, num_symbols, num_actions)
    slab, layout = pack_params(params)

    # ids in [0, num_symbols]; value == num_symbols exercises the padding mask
    x_ids = jax.random.randint(xkey, (B, T), 0, num_symbols + 1, dtype=jnp.int32)
    state = jnp.zeros((2, hidden_size), jnp.float32)   # rows (hx, cx) == self.reset()

    logits, state_new = net_lstm_forward(slab, layout, x_ids, state, num_actions)
    jax.block_until_ready((logits, state_new))

    hx_new = state_new[0:1, :]
    cx_new = state_new[1:2, :]

    ref_logits, ref_hx, ref_cx = reference_forward(
        params, x_ids,
        jnp.zeros((1, hidden_size), jnp.float32),
        jnp.zeros((1, hidden_size), jnp.float32))
    np.testing.assert_allclose(np.asarray(logits), np.asarray(ref_logits),
                               rtol=1e-3, atol=1e-3)
    np.testing.assert_allclose(np.asarray(hx_new), np.asarray(ref_hx),
                               rtol=1e-3, atol=1e-3)
    np.testing.assert_allclose(np.asarray(cx_new), np.asarray(ref_cx),
                               rtol=1e-3, atol=1e-3)
    print("KERNEL_OK")
</pallas_src>

<mosaic_0001>
module attributes {stable_mosaic.version = 11 : i64} {
  func.func @kernel(%arg0: memref<8x1xi32, #tpu.memory_space<vmem>>, %arg1: memref<216x128xf32, #tpu.memory_space<vmem>>, %arg2: memref<2x20xf32, #tpu.memory_space<vmem>>, %arg3: memref<1x4xf32, #tpu.memory_space<vmem>>, %arg4: memref<2x20xf32, #tpu.memory_space<vmem>>) attributes {dimension_semantics = [], scalar_prefetch = 0 : i64, scratch_operands = 0 : i64, tpu.core_type = #tpu.core_type<tc>} {
    %c0 = arith.constant 0 : index
    %c0_0 = arith.constant 0 : index
    %0 = vector.load %arg0[%c0, %c0_0] : memref<8x1xi32, #tpu.memory_space<vmem>>, vector<8x1xi32>
    %1 = tpu.iota {dimensions = array<i32: 1>} : vector<8x11xi32>
    %2 = vector.broadcast %0 : vector<8x1xi32> to vector<8x11xi32>
    %3 = arith.cmpi eq, %2, %1 : vector<8x11xi32>
    %4 = arith.extui %3 : vector<8x11xi1> to vector<8x11xi32>
    %5 = arith.sitofp %4 : vector<8x11xi32> to vector<8x11xf32>
    %c10_i32 = arith.constant 10 : i32
    %6 = vector.broadcast %c10_i32 : i32 to vector<8x1xi32>
    %7 = arith.cmpi ne, %0, %6 : vector<8x1xi32>
    %8 = arith.extui %7 : vector<8x1xi1> to vector<8x1xi32>
    %9 = arith.sitofp %8 : vector<8x1xi32> to vector<8x1xf32>
    %10 = vector.broadcast %9 : vector<8x1xf32> to vector<8x11xf32>
    %11 = arith.mulf %5, %10 : vector<8x11xf32>
    %c0_1 = arith.constant 0 : index
    %c0_2 = arith.constant 0 : index
    %12 = vector.load %arg1[%c0_1, %c0_2] : memref<216x128xf32, #tpu.memory_space<vmem>>, vector<11x20xf32>
    %cst = arith.constant dense<0.000000e+00> : vector<8x20xf32>
    %13 = tpu.matmul %11, %12, %cst {dimension_numbers = #tpu.dot_dimension_numbers<[1], [0], [0], [1], [0, 0, 1, 1], [], []>} : vector<8x11xf32>, vector<11x20xf32>, vector<8x20xf32> -> vector<8x20xf32>
    %c16 = arith.constant 16 : index
    %c0_3 = arith.constant 0 : index
    %14 = vector.load %arg1[%c16, %c0_3] : memref<216x128xf32, #tpu.memory_space<vmem>>, vector<20x80xf32>
    %cst_4 = arith.constant dense<0.000000e+00> : vector<8x80xf32>
    %15 = tpu.matmul %13, %14, %cst_4 {dimension_numbers = #tpu.dot_dimension_numbers<[1], [0], [0], [1], [0, 0, 1, 1], [], []>} : vector<8x20xf32>, vector<20x80xf32>, vector<8x80xf32> -> vector<8x80xf32>
    %c64 = arith.constant 64 : index
    %c0_5 = arith.constant 0 : index
    %16 = vector.load %arg1[%c64, %c0_5] : memref<216x128xf32, #tpu.memory_space<vmem>>, vector<1x80xf32>
    %17 = vector.broadcast %16 : vector<1x80xf32> to vector<8x80xf32>
    %18 = arith.addf %15, %17 : vector<8x80xf32>
    %c40 = arith.constant 40 : index
    %c0_6 = arith.constant 0 : index
    %19 = vector.load %arg1[%c40, %c0_6] : memref<216x128xf32, #tpu.memory_space<vmem>>, vector<20x80xf32>
    %cst_7 = arith.constant 0.000000e+00 : f32
    %20 = vector.broadcast %cst_7 : f32 to vector<1x20xf32>
    %cst_8 = arith.constant 0.000000e+00 : f32
    %21 = vector.broadcast %cst_8 : f32 to vector<1x20xf32>
    %cst_9 = arith.constant 0.000000e+00 : f32
    %22 = vector.broadcast %cst_9 : f32 to vector<1x20xf32>
    %23 = vector.extract_strided_slice %18 {offsets = [0, 0], sizes = [1, 80], strides = [1, 1]} : vector<8x80xf32> to vector<1x80xf32>
    %cst_10 = arith.constant dense<0.000000e+00> : vector<1x80xf32>
    %24 = tpu.matmul %20, %19, %cst_10 {dimension_numbers = #tpu.dot_dimension_numbers<[1], [0], [0], [1], [0, 0, 1, 1], [], []>} : vector<1x20xf32>, vector<20x80xf32>, vector<1x80xf32> -> vector<1x80xf32>
    %25 = arith.addf %23, %24 : vector<1x80xf32>
    %26 = arith.negf %25 : vector<1x80xf32>
    %27 = math.exp %26 : vector<1x80xf32>
    %cst_11 = arith.constant 1.000000e+00 : f32
    %28 = vector.broadcast %cst_11 : f32 to vector<1x80xf32>
    %29 = arith.addf %28, %27 : vector<1x80xf32>
    %30 = arith.divf %28, %29 : vector<1x80xf32>
    %31 = math.tanh %25 : vector<1x80xf32>
    %32 = vector.extract_strided_slice %30 {offsets = [0, 0], sizes = [1, 20], strides = [1, 1]} : vector<1x80xf32> to vector<1x20xf32>
    %33 = vector.extract_strided_slice %30 {offsets = [0, 20], sizes = [1, 20], strides = [1, 1]} : vector<1x80xf32> to vector<1x20xf32>
    %34 = vector.extract_strided_slice %31 {offsets = [0, 40], sizes = [1, 20], strides = [1, 1]} : vector<1x80xf32> to vector<1x20xf32>
    %35 = vector.extract_strided_slice %30 {offsets = [0, 60], sizes = [1, 20], strides = [1, 1]} : vector<1x80xf32> to vector<1x20xf32>
    %36 = arith.mulf %33, %21 : vector<1x20xf32>
    %37 = arith.mulf %32, %34 : vector<1x20xf32>
    %38 = arith.addf %36, %37 : vector<1x20xf32>
    %39 = math.tanh %38 : vector<1x20xf32>
    %40 = arith.mulf %35, %39 : vector<1x20xf32>
    %41 = arith.addf %22, %40 : vector<1x20xf32>
    %42 = vector.extract_strided_slice %18 {offsets = [1, 0], sizes = [1, 80], strides = [1, 1]} : vector<8x80xf32> to vector<1x80xf32>
    %cst_12 = arith.constant dense<0.000000e+00> : vector<1x80xf32>
    %43 = tpu.matmul %40, %19, %cst_12 {dimension_numbers = #tpu.dot_dimension_numbers<[1], [0], [0], [1], [0, 0, 1, 1], [], []>} : vector<1x20xf32>, vector<20x80xf32>, vector<1x80xf32> -> vector<1x80xf32>
    %44 = arith.addf %42, %43 : vector<1x80xf32>
    %45 = arith.negf %44 : vector<1x80xf32>
    %46 = math.exp %45 : vector<1x80xf32>
    %cst_13 = arith.constant 1.000000e+00 : f32
    %47 = vector.broadcast %cst_13 : f32 to vector<1x80xf32>
    %48 = arith.addf %47, %46 : vector<1x80xf32>
    %49 = arith.divf %47, %48 : vector<1x80xf32>
    %50 = math.tanh %44 : vector<1x80xf32>
    %51 = vector.extract_strided_slice %49 {offsets = [0, 0], sizes = [1, 20], strides = [1, 1]} : vector<1x80xf32> to vector<1x20xf32>
    %52 = vector.extract_strided_slice %49 {offsets = [0, 20], sizes = [1, 20], strides = [1, 1]} : vector<1x80xf32> to vector<1x20xf32>
    %53 = vector.extract_strided_slice %50 {offsets = [0, 40], sizes = [1, 20], strides = [1, 1]} : vector<1x80xf32> to vector<1x20xf32>
    %54 = vector.extract_strided_slice %49 {offsets = [0, 60], sizes = [1, 20], strides = [1, 1]} : vector<1x80xf32> to vector<1x20xf32>
    %55 = arith.mulf %52, %38 : vector<1x20xf32>
    %56 = arith.mulf %51, %53 : vector<1x20xf32>
    %57 = arith.addf %55, %56 : vector<1x20xf32>
    %58 = math.tanh %57 : vector<1x20xf32>
    %59 = arith.mulf %54, %58 : vector<1x20xf32>
    %60 = arith.addf %41, %59 : vector<1x20xf32>
    %61 = vector.extract_strided_slice %18 {offsets = [2, 0], sizes = [1, 80], strides = [1, 1]} : vector<8x80xf32> to vector<1x80xf32>
    %cst_14 = arith.constant dense<0.000000e+00> : vector<1x80xf32>
    %62 = tpu.matmul %59, %19, %cst_14 {dimension_numbers = #tpu.dot_dimension_numbers<[1], [0], [0], [1], [0, 0, 1, 1], [], []>} : vector<1x20xf32>, vector<20x80xf32>, vector<1x80xf32> -> vector<1x80xf32>
    %63 = arith.addf %61, %62 : vector<1x80xf32>
    %64 = arith.negf %63 : vector<1x80xf32>
    %65 = math.exp %64 : vector<1x80xf32>
    %cst_15 = arith.constant 1.000000e+00 : f32
    %66 = vector.broadcast %cst_15 : f32 to vector<1x80xf32>
    %67 = arith.addf %66, %65 : vector<1x80xf32>
    %68 = arith.divf %66, %67 : vector<1x80xf32>
    %69 = math.tanh %63 : vector<1x80xf32>
    %70 = vector.extract_strided_slice %68 {offsets = [0, 0], sizes = [1, 20], strides = [1, 1]} : vector<1x80xf32> to vector<1x20xf32>
    %71 = vector.extract_strided_slice %68 {offsets = [0, 20], sizes = [1, 20], strides = [1, 1]} : vector<1x80xf32> to vector<1x20xf32>
    %72 = vector.extract_strided_slice %69 {offsets = [0, 40], sizes = [1, 20], strides = [1, 1]} : vector<1x80xf32> to vector<1x20xf32>
    %73 = vector.extract_strided_slice %68 {offsets = [0, 60], sizes = [1, 20], strides = [1, 1]} : vector<1x80xf32> to vector<1x20xf32>
    %74 = arith.mulf %71, %57 : vector<1x20xf32>
    %75 = arith.mulf %70, %72 : vector<1x20xf32>
    %76 = arith.addf %74, %75 : vector<1x20xf32>
    %77 = math.tanh %76 : vector<1x20xf32>
    %78 = arith.mulf %73, %77 : vector<1x20xf32>
    %79 = arith.addf %60, %78 : vector<1x20xf32>
    %80 = vector.extract_strided_slice %18 {offsets = [3, 0], sizes = [1, 80], strides = [1, 1]} : vector<8x80xf32> to vector<1x80xf32>
    %cst_16 = arith.constant dense<0.000000e+00> : vector<1x80xf32>
    %81 = tpu.matmul %78, %19, %cst_16 {dimension_numbers = #tpu.dot_dimension_numbers<[1], [0], [0], [1], [0, 0, 1, 1], [], []>} : vector<1x20xf32>, vector<20x80xf32>, vector<1x80xf32> -> vector<1x80xf32>
    %82 = arith.addf %80, %81 : vector<1x80xf32>
    %83 = arith.negf %82 : vector<1x80xf32>
    %84 = math.exp %83 : vector<1x80xf32>
    %cst_17 = arith.constant 1.000000e+00 : f32
    %85 = vector.broadcast %cst_17 : f32 to vector<1x80xf32>
    %86 = arith.addf %85, %84 : vector<1x80xf32>
    %87 = arith.divf %85, %86 : vector<1x80xf32>
    %88 = math.tanh %82 : vector<1x80xf32>
    %89 = vector.extract_strided_slice %87 {offsets = [0, 0], sizes = [1, 20], strides = [1, 1]} : vector<1x80xf32> to vector<1x20xf32>
    %90 = vector.extract_strided_slice %87 {offsets = [0, 20], sizes = [1, 20], strides = [1, 1]} : vector<1x80xf32> to vector<1x20xf32>
    %91 = vector.extract_strided_slice %88 {offsets = [0, 40], sizes = [1, 20], strides = [1, 1]} : vector<1x80xf32> to vector<1x20xf32>
    %92 = vector.extract_strided_slice %87 {offsets = [0, 60], sizes = [1, 20], strides = [1, 1]} : vector<1x80xf32> to vector<1x20xf32>
    %93 = arith.mulf %90, %76 : vector<1x20xf32>
    %94 = arith.mulf %89, %91 : vector<1x20xf32>
    %95 = arith.addf %93, %94 : vector<1x20xf32>
    %96 = math.tanh %95 : vector<1x20xf32>
    %97 = arith.mulf %92, %96 : vector<1x20xf32>
    %98 = arith.addf %79, %97 : vector<1x20xf32>
    %99 = vector.extract_strided_slice %18 {offsets = [4, 0], sizes = [1, 80], strides = [1, 1]} : vector<8x80xf32> to vector<1x80xf32>
    %cst_18 = arith.constant dense<0.000000e+00> : vector<1x80xf32>
    %100 = tpu.matmul %97, %19, %cst_18 {dimension_numbers = #tpu.dot_dimension_numbers<[1], [0], [0], [1], [0, 0, 1, 1], [], []>} : vector<1x20xf32>, vector<20x80xf32>, vector<1x80xf32> -> vector<1x80xf32>
    %101 = arith.addf %99, %100 : vector<1x80xf32>
    %102 = arith.negf %101 : vector<1x80xf32>
    %103 = math.exp %102 : vector<1x80xf32>
    %cst_19 = arith.constant 1.000000e+00 : f32
    %104 = vector.broadcast %cst_19 : f32 to vector<1x80xf32>
    %105 = arith.addf %104, %103 : vector<1x80xf32>
    %106 = arith.divf %104, %105 : vector<1x80xf32>
    %107 = math.tanh %101 : vector<1x80xf32>
    %108 = vector.extract_strided_slice %106 {offsets = [0, 0], sizes = [1, 20], strides = [1, 1]} : vector<1x80xf32> to vector<1x20xf32>
    %109 = vector.extract_strided_slice %106 {offsets = [0, 20], sizes = [1, 20], strides = [1, 1]} : vector<1x80xf32> to vector<1x20xf32>
    %110 = vector.extract_strided_slice %107 {offsets = [0, 40], sizes = [1, 20], strides = [1, 1]} : vector<1x80xf32> to vector<1x20xf32>
    %111 = vector.extract_strided_slice %106 {offsets = [0, 60], sizes = [1, 20], strides = [1, 1]} : vector<1x80xf32> to vector<1x20xf32>
    %112 = arith.mulf %109, %95 : vector<1x20xf32>
    %113 = arith.mulf %108, %110 : vector<1x20xf32>
    %114 = arith.addf %112, %113 : vector<1x20xf32>
    %115 = math.tanh %114 : vector<1x20xf32>
    %116 = arith.mulf %111, %115 : vector<1x20xf32>
    %117 = arith.addf %98, %116 : vector<1x20xf32>
    %118 = vector.extract_strided_slice %18 {offsets = [5, 0], sizes = [1, 80], strides = [1, 1]} : vector<8x80xf32> to vector<1x80xf32>
    %cst_20 = arith.constant dense<0.000000e+00> : vector<1x80xf32>
    %119 = tpu.matmul %116, %19, %cst_20 {dimension_numbers = #tpu.dot_dimension_numbers<[1], [0], [0], [1], [0, 0, 1, 1], [], []>} : vector<1x20xf32>, vector<20x80xf32>, vector<1x80xf32> -> vector<1x80xf32>
    %120 = arith.addf %118, %119 : vector<1x80xf32>
    %121 = arith.negf %120 : vector<1x80xf32>
    %122 = math.exp %121 : vector<1x80xf32>
    %cst_21 = arith.constant 1.000000e+00 : f32
    %123 = vector.broadcast %cst_21 : f32 to vector<1x80xf32>
    %124 = arith.addf %123, %122 : vector<1x80xf32>
    %125 = arith.divf %123, %124 : vector<1x80xf32>
    %126 = math.tanh %120 : vector<1x80xf32>
    %127 = vector.extract_strided_slice %125 {offsets = [0, 0], sizes = [1, 20], strides = [1, 1]} : vector<1x80xf32> to vector<1x20xf32>
    %128 = vector.extract_strided_slice %125 {offsets = [0, 20], sizes = [1, 20], strides = [1, 1]} : vector<1x80xf32> to vector<1x20xf32>
    %129 = vector.extract_strided_slice %126 {offsets = [0, 40], sizes = [1, 20], strides = [1, 1]} : vector<1x80xf32> to vector<1x20xf32>
    %130 = vector.extract_strided_slice %125 {offsets = [0, 60], sizes = [1, 20], strides = [1, 1]} : vector<1x80xf32> to vector<1x20xf32>
    %131 = arith.mulf %128, %114 : vector<1x20xf32>
    %132 = arith.mulf %127, %129 : vector<1x20xf32>
    %133 = arith.addf %131, %132 : vector<1x20xf32>
    %134 = math.tanh %133 : vector<1x20xf32>
    %135 = arith.mulf %130, %134 : vector<1x20xf32>
    %136 = arith.addf %117, %135 : vector<1x20xf32>
    %137 = vector.extract_strided_slice %18 {offsets = [6, 0], sizes = [1, 80], strides = [1, 1]} : vector<8x80xf32> to vector<1x80xf32>
    %cst_22 = arith.constant dense<0.000000e+00> : vector<1x80xf32>
    %138 = tpu.matmul %135, %19, %cst_22 {dimension_numbers = #tpu.dot_dimension_numbers<[1], [0], [0], [1], [0, 0, 1, 1], [], []>} : vector<1x20xf32>, vector<20x80xf32>, vector<1x80xf32> -> vector<1x80xf32>
    %139 = arith.addf %137, %138 : vector<1x80xf32>
    %140 = arith.negf %139 : vector<1x80xf32>
    %141 = math.exp %140 : vector<1x80xf32>
    %cst_23 = arith.constant 1.000000e+00 : f32
    %142 = vector.broadcast %cst_23 : f32 to vector<1x80xf32>
    %143 = arith.addf %142, %141 : vector<1x80xf32>
    %144 = arith.divf %142, %143 : vector<1x80xf32>
    %145 = math.tanh %139 : vector<1x80xf32>
    %146 = vector.extract_strided_slice %144 {offsets = [0, 0], sizes = [1, 20], strides = [1, 1]} : vector<1x80xf32> to vector<1x20xf32>
    %147 = vector.extract_strided_slice %144 {offsets = [0, 20], sizes = [1, 20], strides = [1, 1]} : vector<1x80xf32> to vector<1x20xf32>
    %148 = vector.extract_strided_slice %145 {offsets = [0, 40], sizes = [1, 20], strides = [1, 1]} : vector<1x80xf32> to vector<1x20xf32>
    %149 = vector.extract_strided_slice %144 {offsets = [0, 60], sizes = [1, 20], strides = [1, 1]} : vector<1x80xf32> to vector<1x20xf32>
    %150 = arith.mulf %147, %133 : vector<1x20xf32>
    %151 = arith.mulf %146, %148 : vector<1x20xf32>
    %152 = arith.addf %150, %151 : vector<1x20xf32>
    %153 = math.tanh %152 : vector<1x20xf32>
    %154 = arith.mulf %149, %153 : vector<1x20xf32>
    %155 = arith.addf %136, %154 : vector<1x20xf32>
    %156 = vector.extract_strided_slice %18 {offsets = [7, 0], sizes = [1, 80], strides = [1, 1]} : vector<8x80xf32> to vector<1x80xf32>
    %cst_24 = arith.constant dense<0.000000e+00> : vector<1x80xf32>
    %157 = tpu.matmul %154, %19, %cst_24 {dimension_numbers = #tpu.dot_dimension_numbers<[1], [0], [0], [1], [0, 0, 1, 1], [], []>} : vector<1x20xf32>, vector<20x80xf32>, vector<1x80xf32> -> vector<1x80xf32>
    %158 = arith.addf %156, %157 : vector<1x80xf32>
    %159 = arith.negf %158 : vector<1x80xf32>
    %160 = math.exp %159 : vector<1x80xf32>
    %cst_25 = arith.constant 1.000000e+00 : f32
    %161 = vector.broadcast %cst_25 : f32 to vector<1x80xf32>
    %162 = arith.addf %161, %160 : vector<1x80xf32>
    %163 = arith.divf %161, %162 : vector<1x80xf32>
    %164 = math.tanh %158 : vector<1x80xf32>
    %165 = vector.extract_strided_slice %163 {offsets = [0, 0], sizes = [1, 20], strides = [1, 1]} : vector<1x80xf32> to vector<1x20xf32>
    %166 = vector.extract_strided_slice %163 {offsets = [0, 20], sizes = [1, 20], strides = [1, 1]} : vector<1x80xf32> to vector<1x20xf32>
    %167 = vector.extract_strided_slice %164 {offsets = [0, 40], sizes = [1, 20], strides = [1, 1]} : vector<1x80xf32> to vector<1x20xf32>
    %168 = vector.extract_strided_slice %163 {offsets = [0, 60], sizes = [1, 20], strides = [1, 1]} : vector<1x80xf32> to vector<1x20xf32>
    %169 = arith.mulf %166, %152 : vector<1x20xf32>
    %170 = arith.mulf %165, %167 : vector<1x20xf32>
    %171 = arith.addf %169, %170 : vector<1x20xf32>
    %172 = math.tanh %171 : vector<1x20xf32>
    %173 = arith.mulf %168, %172 : vector<1x20xf32>
    %174 = arith.addf %155, %173 : vector<1x20xf32>
    %c0_26 = arith.constant 0 : index
    %c0_27 = arith.constant 0 : index
    %175 = vector.load %arg2[%c0_26, %c0_27] : memref<2x20xf32, #tpu.memory_space<vmem>>, vector<1x20xf32>
    %c1 = arith.constant 1 : index
    %c0_28 = arith.constant 0 : index
    %176 = vector.load %arg2[%c1, %c0_28] : memref<2x20xf32, #tpu.memory_space<vmem>>, vector<1x20xf32>
    %c72 = arith.constant 72 : index
    %c0_29 = arith.constant 0 : index
    %177 = vector.load %arg1[%c72, %c0_29] : memref<216x128xf32, #tpu.memory_space<vmem>>, vector<20x80xf32>
    %cst_30 = arith.constant dense<0.000000e+00> : vector<1x80xf32>
    %178 = tpu.matmul %174, %177, %cst_30 {dimension_numbers = #tpu.dot_dimension_numbers<[1], [0], [0], [1], [0, 0, 1, 1], [], []>} : vector<1x20xf32>, vector<20x80xf32>, vector<1x80xf32> -> vector<1x80xf32>
    %c96 = arith.constant 96 : index
    %c0_31 = arith.constant 0 : index
    %179 = vector.load %arg1[%c96, %c0_31] : memref<216x128xf32, #tpu.memory_space<vmem>>, vector<20x80xf32>
    %cst_32 = arith.constant dense<0.000000e+00> : vector<1x80xf32>
    %180 = tpu.matmul %175, %179, %cst_32 {dimension_numbers = #tpu.dot_dimension_numbers<[1], [0], [0], [1], [0, 0, 1, 1], [], []>} : vector<1x20xf32>, vector<20x80xf32>, vector<1x80xf32> -> vector<1x80xf32>
    %181 = arith.addf %178, %180 : vector<1x80xf32>
    %c120 = arith.constant 120 : index
    %c0_33 = arith.constant 0 : index
    %182 = vector.load %arg1[%c120, %c0_33] : memref<216x128xf32, #tpu.memory_space<vmem>>, vector<1x80xf32>
    %183 = arith.addf %181, %182 : vector<1x80xf32>
    %184 = arith.negf %183 : vector<1x80xf32>
    %185 = math.exp %184 : vector<1x80xf32>
    %cst_34 = arith.constant 1.000000e+00 : f32
    %186 = vector.broadcast %cst_34 : f32 to vector<1x80xf32>
    %187 = arith.addf %186, %185 : vector<1x80xf32>
    %188 = arith.divf %186, %187 : vector<1x80xf32>
    %189 = math.tanh %183 : vector<1x80xf32>
    %190 = vector.extract_strided_slice %188 {offsets = [0, 0], sizes = [1, 20], strides = [1, 1]} : vector<1x80xf32> to vector<1x20xf32>
    %191 = vector.extract_strided_slice %188 {offsets = [0, 20], sizes = [1, 20], strides = [1, 1]} : vector<1x80xf32> to vector<1x20xf32>
    %192 = vector.extract_strided_slice %189 {offsets = [0, 40], sizes = [1, 20], strides = [1, 1]} : vector<1x80xf32> to vector<1x20xf32>
    %193 = vector.extract_strided_slice %188 {offsets = [0, 60], sizes = [1, 20], strides = [1, 1]} : vector<1x80xf32> to vector<1x20xf32>
    %194 = arith.mulf %191, %176 : vector<1x20xf32>
    %195 = arith.mulf %190, %192 : vector<1x20xf32>
    %196 = arith.addf %194, %195 : vector<1x20xf32>
    %197 = math.tanh %196 : vector<1x20xf32>
    %198 = arith.mulf %193, %197 : vector<1x20xf32>
    %c128 = arith.constant 128 : index
    %c0_35 = arith.constant 0 : index
    %199 = vector.load %arg1[%c128, %c0_35] : memref<216x128xf32, #tpu.memory_space<vmem>>, vector<20x20xf32>
    %cst_36 = arith.constant dense<0.000000e+00> : vector<1x20xf32>
    %200 = tpu.matmul %174, %199, %cst_36 {dimension_numbers = #tpu.dot_dimension_numbers<[1], [0], [0], [1], [0, 0, 1, 1], [], []>} : vector<1x20xf32>, vector<20x20xf32>, vector<1x20xf32> -> vector<1x20xf32>
    %c152 = arith.constant 152 : index
    %c0_37 = arith.constant 0 : index
    %201 = vector.load %arg1[%c152, %c0_37] : memref<216x128xf32, #tpu.memory_space<vmem>>, vector<20x20xf32>
    %cst_38 = arith.constant dense<0.000000e+00> : vector<1x20xf32>
    %202 = tpu.matmul %198, %201, %cst_38 {dimension_numbers = #tpu.dot_dimension_numbers<[1], [0], [0], [1], [0, 0, 1, 1], [], []>} : vector<1x20xf32>, vector<20x20xf32>, vector<1x20xf32> -> vector<1x20xf32>
    %203 = arith.addf %200, %202 : vector<1x20xf32>
    %c176 = arith.constant 176 : index
    %c0_39 = arith.constant 0 : index
    %204 = vector.load %arg1[%c176, %c0_39] : memref<216x128xf32, #tpu.memory_space<vmem>>, vector<1x20xf32>
    %205 = arith.addf %203, %204 : vector<1x20xf32>
    %cst_40 = arith.constant 0.000000e+00 : f32
    %206 = vector.broadcast %cst_40 : f32 to vector<1x20xf32>
    %207 = arith.maximumf %205, %206 : vector<1x20xf32>
    %c184 = arith.constant 184 : index
    %c0_41 = arith.constant 0 : index
    %208 = vector.load %arg1[%c184, %c0_41] : memref<216x128xf32, #tpu.memory_space<vmem>>, vector<20x4xf32>
    %cst_42 = arith.constant dense<0.000000e+00> : vector<1x4xf32>
    %209 = tpu.matmul %207, %208, %cst_42 {dimension_numbers = #tpu.dot_dimension_numbers<[1], [0], [0], [1], [0, 0, 1, 1], [], []>} : vector<1x20xf32>, vector<20x4xf32>, vector<1x4xf32> -> vector<1x4xf32>
    %c208 = arith.constant 208 : index
    %c0_43 = arith.constant 0 : index
    %210 = vector.load %arg1[%c208, %c0_43] : memref<216x128xf32, #tpu.memory_space<vmem>>, vector<1x4xf32>
    %211 = arith.addf %209, %210 : vector<1x4xf32>
    %c0_44 = arith.constant 0 : index
    %c0_45 = arith.constant 0 : index
    %212 = vector.load %arg3[%c0_44, %c0_45] : memref<1x4xf32, #tpu.memory_space<vmem>>, vector<1x4xf32>
    tpu.vector_store %arg3[%c0_44, %c0_45], %211 {strides = array<i32>} : memref<1x4xf32, #tpu.memory_space<vmem>>, vector<1x4xf32>,
    %213 = tpu.concatenate %198, %196 in 0 : vector<1x20xf32>, vector<1x20xf32> -> vector<2x20xf32>
    %c0_46 = arith.constant 0 : index
    %c0_47 = arith.constant 0 : index
    %214 = vector.load %arg4[%c0_46, %c0_47] : memref<2x20xf32, #tpu.memory_space<vmem>>, vector<2x20xf32>
    tpu.vector_store %arg4[%c0_46, %c0_47], %213 {strides = array<i32>} : memref<2x20xf32, #tpu.memory_space<vmem>>, vector<2x20xf32>,
    return
  }
}

</mosaic_0001>

<llo_original>
// kernel: tpu_custom_call.1
$region0: #{tpu_custom_call.1}
  #allocation0 [shape = 'u32[]', space=smem, size = 0x4, offset = 0x4, fixed_abs, tag = 'smem constant byte address 0x4 - core index']
  #allocation1 [shape = 'u32[72,128]{1,0:T(1,128)}', space=vmem, size = 0x9000, scoped, tag = 'internal scratch']
  %s0 = inlined_call_operand.vmem [shape: s32[8,1], index: 0, kind: input, shape index: {}]
  %s1 = inlined_call_operand.hbm [shape: f32[216,128], index: 1, kind: input, shape index: {}]
  %s2 = inlined_call_operand.hbm [shape: f32[2,20], index: 2, kind: input, shape index: {}, may-alias: {2,4}]
  %s3 = inlined_call_operand.hbm [shape: f32[1,4], index: 3, kind: output, shape index: {0}]
  %s4 = inlined_call_operand.hbm [shape: f32[2,20], index: 4, kind: output, shape index: {1}, may-alias: {2,4}]
  %5 = xla_tuple %s3, %s4
  %s6 = sld [smem:[#allocation0]]
  $region38: #{tpu_custom_call.1} parent=0
    _
  %s8 = ssub.s32 1, %s6
  %s9 = scalar_select 0, %s8, %s6
  $region1: #{tpu_custom_call.1} parent=0
    #allocation2 [shape = 'u8[110592]{0}', space=vmem, size = 0x1b000, scoped, tag = 'input window, operand 1, single buffered']
    #allocation3 [shape = 's32[1]{0}', space=sflag, size = 0x4, scoped, tag = 'scoped memory for tpu_custom_call.1']
    #allocation4 [shape = 's32[1]{0}', space=sflag, size = 0x4, scoped, tag = 'scoped memory for tpu_custom_call.1']
    #allocation5 [shape = 'u8[1024]{0}', space=vmem, size = 0x400, scoped, tag = 'input window, operand 2, single buffered']
    #allocation6 [shape = 's32[1]{0}', space=sflag, size = 0x4, scoped, tag = 'scoped memory for tpu_custom_call.1']
    #allocation7 [shape = 'u8[512]{0}', space=vmem, size = 0x400, scoped, tag = 'output window, operand 0, single buffered']
    #allocation8 [shape = 'u8[1024]{0}', space=vmem, size = 0x400, scoped, tag = 'output window, operand 1, single buffered']
    #allocation9 [shape = 's32[1]{0}', space=sflag, size = 0x4, scoped, tag = 'scoped memory for tpu_custom_call.1']
    %10 = vsyncpa [#allocation3], 0
    %11 = vsyncpa [#allocation6], 0
    %12 = vsyncpa [#allocation4], 0
    %13 = vsyncpa [#allocation9], 0
    // Predicated region
    $region2: #{tpu_custom_call.1} parent=1 // pred_check
      _
    $region3: #{tpu_custom_call.1} parent=1 // pred_check_branch
      %15 = sbr.rel (0) target = $region5
    $region4: #{tpu_custom_call.1} parent=1 // pred_region
      _
    $region5: #{tpu_custom_call.1} parent=1 // pred_fallthru
      _
    // Predicated region
    $region6: #{tpu_custom_call.1} parent=1 // pred_check
      _
    $region7: #{tpu_custom_call.1} parent=1 // pred_check_branch
      %17 = sbr.rel (0) target = $region9
    $region8: #{tpu_custom_call.1} parent=1 // pred_region
      %19 = vsyncadd [#allocation3], 0
      %s20 = sshll.u32 %s1, 4
      %s21 = int_to_ptr.hbm [resolvable:$true] %s20
      %s22 = sshll.u32 [#allocation2], 4
      %s23 = int_to_ptr.vmem [resolvable:$true] %s22
      %28 = dma.hbm_to_vmem [thread:$0]  %s21, 3456, %s23, [#allocation3], 128, 128, 8
    $region9: #{tpu_custom_call.1} parent=1 // pred_fallthru
      _
    // Predicated region
    $region10: #{tpu_custom_call.1} parent=1 // pred_check
      _
    $region11: #{tpu_custom_call.1} parent=1 // pred_check_branch
      %30 = sbr.rel (0) target = $region13
    $region12: #{tpu_custom_call.1} parent=1 // pred_region
      %32 = vsyncadd [#allocation6], 0
      %s34 = sshll.u32 %s2, 4
      %s35 = int_to_ptr.hbm [resolvable:$true] %s34
      %s36 = sshll.u32 [#allocation5], 4
      %s37 = int_to_ptr.vmem [resolvable:$true] %s36
      %39 = dma.hbm_to_vmem [thread:$0]  %s35, 32, %s37, [#allocation6]
    $region13: #{tpu_custom_call.1} parent=1 // pred_fallthru
      _
    // Predicated region
    $region14: #{tpu_custom_call.1} parent=1 // pred_check
      _
    $region15: #{tpu_custom_call.1} parent=1 // pred_check_branch
      %41 = sbr.rel (0) target = $region17
    $region16: #{tpu_custom_call.1} parent=1 // pred_region
      %43 = dma.done [#allocation3], 3456
    $region17: #{tpu_custom_call.1} parent=1 // pred_fallthru
      _
    // Predicated region
    $region18: #{tpu_custom_call.1} parent=1 // pred_check
      _
    $region19: #{tpu_custom_call.1} parent=1 // pred_check_branch
      %45 = sbr.rel (0) target = $region21
    $region20: #{tpu_custom_call.1} parent=1 // pred_region
      %47 = dma.done [#allocation6], 32
    $region21: #{tpu_custom_call.1} parent=1 // pred_fallthru
      _
    %v48 = vld [vmem:[%s0] sm:$0xff]
    %v49 = vlaneseq
    %v50 = vand.u32 %v49, 127
    %51 = vset.pattern.permute.xlu0 0
    %52 = vperm.xlu0 %51, %v48
    %v53 = vpop.permute.xlu0 %52
    %vm54 = vcmp.eq.s32.totalorder %v53, %v50
    %v55 = vsel %vm54, 1, 0
    %v56 = vcvt.s32.f32 %v55
    %vm57 = vcmp.ne.s32.totalorder %v48, 10
    %v58 = vsel %vm57, 1, 0
    %v59 = vcvt.s32.f32 %v58
    %61 = vset.pattern.permute.xlu0 0
    %62 = vperm.xlu0 %61, %v59
    %v63 = vpop.permute.xlu0 %62
    %v65 = vmul.f32 %v56, %v63
    %v66 = vld [vmem:[#allocation2] sm:$0xff]
    %v67 = vld [vmem:[#allocation2 + $0x8] sm:$0x7]
    %vm68 = vcmask 89088
    %v70 = vsel %vm68, %v65, 0
    %vm72 = vcmask 1042432
    %v74 = vsel %vm72, %v67, 0
    %76 = vmatpush.msra.mxu0 0.0
    %77 = vmatpush.msra.mxu0 0.0
    %78 = vmatpush.msra.mxu0 0.0
    %79 = vmatpush.msra.mxu0 0.0
    %80 = vmatpush.msra.mxu0 0.0
    %81 = vmatpush.msra.mxu0 0.0
    %82 = vmatpush.msra.mxu0 0.0
    %83 = vmatpush.msra.mxu0 0.0
    %84 = vmatpush.msra.mxu0 0.0
    %85 = vmatpush.msra.mxu0 0.0
    %86 = vmatpush.msra.mxu0 0.0
    %87 = vmatpush.msra.mxu0 0.0
    %88 = vmatpush.msra.mxu0 0.0
    %89 = vmatpush.msra.mxu0 0.0
    %90 = vmatpush.msra.mxu0 %v74
    %91 = vmatpush.msra.mxu0 %v66
    %92 = vmatmul.f32.gmra.mxu0 %v70
    %v93 = vpop.f32.mrf.mxu0
    %v94 = vadd.f32 0.0, %v93
    %95 = vdwg.mxu0
    %v96 = vld [vmem:[#allocation2 + $0x10] sm:$0xff]
    %v97 = vld [vmem:[#allocation2 + $0x18] sm:$0xff]
    %v98 = vld [vmem:[#allocation2 + $0x20] sm:$0xf]
    %v99 = vld [vmem:[#allocation2 + $0x40] sm:$0x1]
    %v100 = vperm.slane %v99, 0
    %vm101 = vcmask 162816
    %v103 = vsel %vm101, %v94, 0
    %vm105 = vcmask 1043456
    %v107 = vsel %vm105, %v98, 0
    %109 = vmatpush.msra.mxu0 0.0
    %110 = vmatpush.msra.mxu0 0.0
    %111 = vmatpush.msra.mxu0 0.0
    %112 = vmatpush.msra.mxu0 0.0
    %113 = vmatpush.msra.mxu0 0.0
    %114 = vmatpush.msra.mxu0 0.0
    %115 = vmatpush.msra.mxu0 0.0
    %116 = vmatpush.msra.mxu0 0.0
    %117 = vmatpush.msra.mxu0 0.0
    %118 = vmatpush.msra.mxu0 0.0
    %119 = vmatpush.msra.mxu0 0.0
    %120 = vmatpush.msra.mxu0 0.0
    %121 = vmatpush.msra.mxu0 0.0
    %122 = vmatpush.msra.mxu0 %v107
    %123 = vmatpush.msra.mxu0 %v97
    %124 = vmatpush.msra.mxu0 %v96
    %125 = vmatmul.f32.gmra.mxu0 %v103
    %v126 = vpop.f32.mrf.mxu0
    %v127 = vadd.f32 %v100, %v126
    %128 = vdwg.mxu0
    %v129 = vld [vmem:[#allocation2 + $0x28] sm:$0xff]
    %v130 = vld [vmem:[#allocation2 + $0x30] sm:$0xff]
    %v131 = vld [vmem:[#allocation2 + $0x38] sm:$0xf]
    %v133 = vsel %vm101, 0.0, 0
    %v136 = vsel %vm105, %v131, 0
    %138 = vmatpush.msra.mxu0 0.0
    %139 = vmatpush.msra.mxu0 0.0
    %140 = vmatpush.msra.mxu0 0.0
    %141 = vmatpush.msra.mxu0 0.0
    %142 = vmatpush.msra.mxu0 0.0
    %143 = vmatpush.msra.mxu0 0.0
    %144 = vmatpush.msra.mxu0 0.0
    %145 = vmatpush.msra.mxu0 0.0
    %146 = vmatpush.msra.mxu0 0.0
    %147 = vmatpush.msra.mxu0 0.0
    %148 = vmatpush.msra.mxu0 0.0
    %149 = vmatpush.msra.mxu0 0.0
    %150 = vmatpush.msra.mxu0 0.0
    %151 = vmatpush.msra.mxu0 %v136
    %152 = vmatpush.msra.mxu0 %v130
    %153 = vmatpush.msra.mxu0 %v129
    %154 = vmatmul.f32.gmra.mxu0 %v133
    %v155 = vpop.f32.mrf.mxu0
    %v156 = vadd.f32 0.0, %v155
    %157 = vdwg.mxu0
    %v158 = vadd.f32 %v127, %v156
    %v159 = vxor.u32 %v158, 2147483648
    %v160 = vmul.f32 %v159, 1.442695
    %v161 = vpow.pop %v160
    %v162 = vadd.f32 %v161, 1.0
    %v163 = vrcp.pop %v162
    %v164 = vmul.f32 %v162, %v163
    %v165 = vsub.f32 1.0, %v164
    %v166 = vmul.f32 %v163, %v165
    %v167 = vadd.f32 %v163, %v166
    %vm168 = vweird.f32 %v162
    %vm169 = vweird.f32 %v163
    %vm170 = vmor %vm168, %vm169
    %v171 = vsel %vm170, %v163, %v167
    %v172 = vand.u32 2147483647, %v162
    %vm173 = vcmp.eq.f32.partialorder %v172, 8.507059e+37
    %v174 = vand.u32 %v162, 2147483648
    %v175 = vor.u32 1.1754944e-38, %v174
    %v176 = vsel %vm173, %v175, %v171
    %v177 = vmul.f32 1.0, %v176
    %v178 = vtanh.pop %v158
    %v179 = vmul.f32 %v177, 0.0
    %181 = vrot.lane.b32.xlu0 %v178, 88
    %v182 = vpop.permute.xlu0 %181
    %v184 = vmul.f32 %v177, %v182
    %186 = vrot.lane.b32.xlu0 %v184, 20
    %v187 = vpop.permute.xlu0 %186
    %v189 = vadd.f32 %v179, %v187
    %v190 = vtanh.pop %v189
    %192 = vrot.lane.b32.xlu0 %v190, 40
    %v193 = vpop.permute.xlu0 %192
    %v195 = vmul.f32 %v177, %v193
    %v196 = vadd.f32 %v195, 0.0
    %198 = vrot.lane.b32.xlu0 %v195, 68
    %v199 = vpop.permute.xlu0 %198
    %v200 = vsel %vm101, %v199, 0
    %202 = vmatpush.msra.mxu0 0.0
    %203 = vmatpush.msra.mxu0 0.0
    %204 = vmatpush.msra.mxu0 0.0
    %205 = vmatpush.msra.mxu0 0.0
    %206 = vmatpush.msra.mxu0 0.0
    %207 = vmatpush.msra.mxu0 0.0
    %208 = vmatpush.msra.mxu0 0.0
    %209 = vmatpush.msra.mxu0 0.0
    %210 = vmatpush.msra.mxu0 0.0
    %211 = vmatpush.msra.mxu0 0.0
    %212 = vmatpush.msra.mxu0 0.0
    %213 = vmatpush.msra.mxu0 0.0
    %214 = vmatpush.msra.mxu0 0.0
    %215 = vmatpush.msra.mxu0 %v136
    %216 = vmatpush.msra.mxu0 %v130
    %217 = vmatpush.msra.mxu0 %v129
    %218 = vmatmul.f32.gmra.mxu0 %v200
    %v219 = vpop.f32.mrf.mxu0
    %v220 = vadd.f32 0.0, %v219
    %221 = vdwg.mxu0
    %v223 = vrot.slane %v220, 7
    %v225 = vadd.f32 %v127, %v223
    %v226 = vxor.u32 %v225, 2147483648
    %v227 = vmul.f32 %v226, 1.442695
    %v228 = vpow.pop %v227
    %v229 = vadd.f32 %v228, 1.0
    %v230 = vrcp.pop %v229
    %v231 = vmul.f32 %v229, %v230
    %v232 = vsub.f32 1.0, %v231
    %v233 = vmul.f32 %v230, %v232
    %v234 = vadd.f32 %v230, %v233
    %vm235 = vweird.f32 %v229
    %vm236 = vweird.f32 %v230
    %vm237 = vmor %vm235, %vm236
    %v238 = vsel %vm237, %v230, %v234
    %v239 = vand.u32 2147483647, %v229
    %vm240 = vcmp.eq.f32.partialorder %v239, 8.507059e+37
    %v241 = vand.u32 %v229, 2147483648
    %v242 = vor.u32 1.1754944e-38, %v241
    %v243 = vsel %vm240, %v242, %v238
    %v244 = vmul.f32 1.0, %v243
    %v245 = vtanh.pop %v225
    %v247 = vrot.slane %v189, 7
    %v249 = vmul.f32 %v244, %v247
    %251 = vrot.lane.b32.xlu0 %v245, 88
    %v252 = vpop.permute.xlu0 %251
    %v254 = vmul.f32 %v244, %v252
    %256 = vrot.lane.b32.xlu0 %v254, 20
    %v257 = vpop.permute.xlu0 %256
    %v259 = vadd.f32 %v249, %v257
    %v260 = vtanh.pop %v259
    %262 = vrot.lane.b32.xlu0 %v260, 40
    %v263 = vpop.permute.xlu0 %262
    %v265 = vmul.f32 %v244, %v263
    %v267 = vrot.slane %v265, 1
    %v269 = vadd.f32 %v196, %v267
    %270 = vrot.lane.b32.xlu0 %v267, 68
    %v271 = vpop.permute.xlu0 %270
    %v272 = vsel %vm101, %v271, 0
    %274 = vmatpush.msra.mxu0 0.0
    %275 = vmatpush.msra.mxu0 0.0
    %276 = vmatpush.msra.mxu0 0.0
    %277 = vmatpush.msra.mxu0 0.0
    %278 = vmatpush.msra.mxu0 0.0
    %279 = vmatpush.msra.mxu0 0.0
    %280 = vmatpush.msra.mxu0 0.0
    %281 = vmatpush.msra.mxu0 0.0
    %282 = vmatpush.msra.mxu0 0.0
    %283 = vmatpush.msra.mxu0 0.0
    %284 = vmatpush.msra.mxu0 0.0
    %285 = vmatpush.msra.mxu0 0.0
    %286 = vmatpush.msra.mxu0 0.0
    %287 = vmatpush.msra.mxu0 %v136
    %288 = vmatpush.msra.mxu0 %v130
    %289 = vmatpush.msra.mxu0 %v129
    %290 = vmatmul.f32.gmra.mxu0 %v272
    %v291 = vpop.f32.mrf.mxu0
    %v292 = vadd.f32 0.0, %v291
    %293 = vdwg.mxu0
    %v295 = vrot.slane %v292, 6
    %v297 = vadd.f32 %v127, %v295
    %v298 = vxor.u32 %v297, 2147483648
    %v299 = vmul.f32 %v298, 1.442695
    %v300 = vpow.pop %v299
    %v301 = vadd.f32 %v300, 1.0
    %v302 = vrcp.pop %v301
    %v303 = vmul.f32 %v301, %v302
    %v304 = vsub.f32 1.0, %v303
    %v305 = vmul.f32 %v302, %v304
    %v306 = vadd.f32 %v302, %v305
    %vm307 = vweird.f32 %v301
    %vm308 = vweird.f32 %v302
    %vm309 = vmor %vm307, %vm308
    %v310 = vsel %vm309, %v302, %v306
    %v311 = vand.u32 2147483647, %v301
    %vm312 = vcmp.eq.f32.partialorder %v311, 8.507059e+37
    %v313 = vand.u32 %v301, 2147483648
    %v314 = vor.u32 1.1754944e-38, %v313
    %v315 = vsel %vm312, %v314, %v310
    %v316 = vmul.f32 1.0, %v315
    %v317 = vtanh.pop %v297
    %v319 = vrot.slane %v259, 7
    %v321 = vmul.f32 %v316, %v319
    %323 = vrot.lane.b32.xlu0 %v317, 88
    %v324 = vpop.permute.xlu0 %323
    %v326 = vmul.f32 %v316, %v324
    %328 = vrot.lane.b32.xlu0 %v326, 20
    %v329 = vpop.permute.xlu0 %328
    %v331 = vadd.f32 %v321, %v329
    %v332 = vtanh.pop %v331
    %334 = vrot.lane.b32.xlu0 %v332, 40
    %v335 = vpop.permute.xlu0 %334
    %v337 = vmul.f32 %v316, %v335
    %v339 = vrot.slane %v337, 2
    %v341 = vadd.f32 %v269, %v339
    %342 = vrot.lane.b32.xlu0 %v339, 68
    %v343 = vpop.permute.xlu0 %342
    %v344 = vsel %vm101, %v343, 0
    %346 = vmatpush.msra.mxu0 0.0
    %347 = vmatpush.msra.mxu0 0.0
    %348 = vmatpush.msra.mxu0 0.0
    %349 = vmatpush.msra.mxu0 0.0
    %350 = vmatpush.msra.mxu0 0.0
    %351 = vmatpush.msra.mxu0 0.0
    %352 = vmatpush.msra.mxu0 0.0
    %353 = vmatpush.msra.mxu0 0.0
    %354 = vmatpush.msra.mxu0 0.0
    %355 = vmatpush.msra.mxu0 0.0
    %356 = vmatpush.msra.mxu0 0.0
    %357 = vmatpush.msra.mxu0 0.0
    %358 = vmatpush.msra.mxu0 0.0
    %359 = vmatpush.msra.mxu0 %v136
    %360 = vmatpush.msra.mxu0 %v130
    %361 = vmatpush.msra.mxu0 %v129
    %362 = vmatmul.f32.gmra.mxu0 %v344
    %v363 = vpop.f32.mrf.mxu0
    %v364 = vadd.f32 0.0, %v363
    %365 = vdwg.mxu0
    %v367 = vrot.slane %v364, 5
    %v369 = vadd.f32 %v127, %v367
    %v370 = vxor.u32 %v369, 2147483648
    %v371 = vmul.f32 %v370, 1.442695
    %v372 = vpow.pop %v371
    %v373 = vadd.f32 %v372, 1.0
    %v374 = vrcp.pop %v373
    %v375 = vmul.f32 %v373, %v374
    %v376 = vsub.f32 1.0, %v375
    %v377 = vmul.f32 %v374, %v376
    %v378 = vadd.f32 %v374, %v377
    %vm379 = vweird.f32 %v373
    %vm380 = vweird.f32 %v374
    %vm381 = vmor %vm379, %vm380
    %v382 = vsel %vm381, %v374, %v378
    %v383 = vand.u32 2147483647, %v373
    %vm384 = vcmp.eq.f32.partialorder %v383, 8.507059e+37
    %v385 = vand.u32 %v373, 2147483648
    %v386 = vor.u32 1.1754944e-38, %v385
    %v387 = vsel %vm384, %v386, %v382
    %v388 = vmul.f32 1.0, %v387
    %v389 = vtanh.pop %v369
    %v391 = vrot.slane %v331, 7
    %v393 = vmul.f32 %v388, %v391
    %395 = vrot.lane.b32.xlu0 %v389, 88
    %v396 = vpop.permute.xlu0 %395
    %v398 = vmul.f32 %v388, %v396
    %400 = vrot.lane.b32.xlu0 %v398, 20
    %v401 = vpop.permute.xlu0 %400
    %v403 = vadd.f32 %v393, %v401
    %v404 = vtanh.pop %v403
    %406 = vrot.lane.b32.xlu0 %v404, 40
    %v407 = vpop.permute.xlu0 %406
    %v409 = vmul.f32 %v388, %v407
    %v411 = vrot.slane %v409, 3
    %v413 = vadd.f32 %v341, %v411
    %414 = vrot.lane.b32.xlu0 %v411, 68
    %v415 = vpop.permute.xlu0 %414
    %v416 = vsel %vm101, %v415, 0
    %418 = vmatpush.msra.mxu0 0.0
    %419 = vmatpush.msra.mxu0 0.0
    %420 = vmatpush.msra.mxu0 0.0
    %421 = vmatpush.msra.mxu0 0.0
    %422 = vmatpush.msra.mxu0 0.0
    %423 = vmatpush.msra.mxu0 0.0
    %424 = vmatpush.msra.mxu0 0.0
    %425 = vmatpush.msra.mxu0 0.0
    %426 = vmatpush.msra.mxu0 0.0
    %427 = vmatpush.msra.mxu0 0.0
    %428 = vmatpush.msra.mxu0 0.0
    %429 = vmatpush.msra.mxu0 0.0
    %430 = vmatpush.msra.mxu0 0.0
    %431 = vmatpush.msra.mxu0 %v136
    %432 = vmatpush.msra.mxu0 %v130
    %433 = vmatpush.msra.mxu0 %v129
    %434 = vmatmul.f32.gmra.mxu0 %v416
    %v435 = vpop.f32.mrf.mxu0
    %v436 = vadd.f32 0.0, %v435
    %437 = vdwg.mxu0
    %v439 = vrot.slane %v436, 4
    %v441 = vadd.f32 %v127, %v439
    %v442 = vxor.u32 %v441, 2147483648
    %v443 = vmul.f32 %v442, 1.442695
    %v444 = vpow.pop %v443
    %v445 = vadd.f32 %v444, 1.0
    %v446 = vrcp.pop %v445
    %v447 = vmul.f32 %v445, %v446
    %v448 = vsub.f32 1.0, %v447
    %v449 = vmul.f32 %v446, %v448
    %v450 = vadd.f32 %v446, %v449
    %vm451 = vweird.f32 %v445
    %vm452 = vweird.f32 %v446
    %vm453 = vmor %vm451, %vm452
    %v454 = vsel %vm453, %v446, %v450
    %v455 = vand.u32 2147483647, %v445
    %vm456 = vcmp.eq.f32.partialorder %v455, 8.507059e+37
    %v457 = vand.u32 %v445, 2147483648
    %v458 = vor.u32 1.1754944e-38, %v457
    %v459 = vsel %vm456, %v458, %v454
    %v460 = vmul.f32 1.0, %v459
    %v461 = vtanh.pop %v441
    %v463 = vrot.slane %v403, 7
    %v465 = vmul.f32 %v460, %v463
    %467 = vrot.lane.b32.xlu0 %v461, 88
    %v468 = vpop.permute.xlu0 %467
    %v470 = vmul.f32 %v460, %v468
    %472 = vrot.lane.b32.xlu0 %v470, 20
    %v473 = vpop.permute.xlu0 %472
    %v475 = vadd.f32 %v465, %v473
    %v476 = vtanh.pop %v475
    %478 = vrot.lane.b32.xlu0 %v476, 40
    %v479 = vpop.permute.xlu0 %478
    %v481 = vmul.f32 %v460, %v479
    %v483 = vrot.slane %v481, 4
    %v485 = vadd.f32 %v413, %v483
    %486 = vrot.lane.b32.xlu0 %v483, 68
    %v487 = vpop.permute.xlu0 %486
    %v488 = vsel %vm101, %v487, 0
    %490 = vmatpush.msra.mxu0 0.0
    %491 = vmatpush.msra.mxu0 0.0
    %492 = vmatpush.msra.mxu0 0.0
    %493 = vmatpush.msra.mxu0 0.0
    %494 = vmatpush.msra.mxu0 0.0
    %495 = vmatpush.msra.mxu0 0.0
    %496 = vmatpush.msra.mxu0 0.0
    %497 = vmatpush.msra.mxu0 0.0
    %498 = vmatpush.msra.mxu0 0.0
    %499 = vmatpush.msra.mxu0 0.0
    %500 = vmatpush.msra.mxu0 0.0
    %501 = vmatpush.msra.mxu0 0.0
    %502 = vmatpush.msra.mxu0 0.0
    %503 = vmatpush.msra.mxu0 %v136
    %504 = vmatpush.msra.mxu0 %v130
    %505 = vmatpush.msra.mxu0 %v129
    %506 = vmatmul.f32.gmra.mxu0 %v488
    %v507 = vpop.f32.mrf.mxu0
    %v508 = vadd.f32 0.0, %v507
    %509 = vdwg.mxu0
    %v511 = vrot.slane %v508, 3
    %v513 = vadd.f32 %v127, %v511
    %v514 = vxor.u32 %v513, 2147483648
    %v515 = vmul.f32 %v514, 1.442695
    %v516 = vpow.pop %v515
    %v517 = vadd.f32 %v516, 1.0
    %v518 = vrcp.pop %v517
    %v519 = vmul.f32 %v517, %v518
    %v520 = vsub.f32 1.0, %v519
    %v521 = vmul.f32 %v518, %v520
    %v522 = vadd.f32 %v518, %v521
    %vm523 = vweird.f32 %v517
    %vm524 = vweird.f32 %v518
    %vm525 = vmor %vm523, %vm524
    %v526 = vsel %vm525, %v518, %v522
    %v527 = vand.u32 2147483647, %v517
    %vm528 = vcmp.eq.f32.partialorder %v527, 8.507059e+37
    %v529 = vand.u32 %v517, 2147483648
    %v530 = vor.u32 1.1754944e-38, %v529
    %v531 = vsel %vm528, %v530, %v526
    %v532 = vmul.f32 1.0, %v531
    %v533 = vtanh.pop %v513
    %v535 = vrot.slane %v475, 7
    %v537 = vmul.f32 %v532, %v535
    %539 = vrot.lane.b32.xlu0 %v533, 88
    %v540 = vpop.permute.xlu0 %539
    %v542 = vmul.f32 %v532, %v540
    %544 = vrot.lane.b32.xlu0 %v542, 20
    %v545 = vpop.permute.xlu0 %544
    %v547 = vadd.f32 %v537, %v545
    %v548 = vtanh.pop %v547
    %550 = vrot.lane.b32.xlu0 %v548, 40
    %v551 = vpop.permute.xlu0 %550
    %v553 = vmul.f32 %v532, %v551
    %v555 = vrot.slane %v553, 5
    %v557 = vadd.f32 %v485, %v555
    %558 = vrot.lane.b32.xlu0 %v555, 68
    %v559 = vpop.permute.xlu0 %558
    %v560 = vsel %vm101, %v559, 0
    %562 = vmatpush.msra.mxu0 0.0
    %563 = vmatpush.msra.mxu0 0.0
    %564 = vmatpush.msra.mxu0 0.0
    %565 = vmatpush.msra.mxu0 0.0
    %566 = vmatpush.msra.mxu0 0.0
    %567 = vmatpush.msra.mxu0 0.0
    %568 = vmatpush.msra.mxu0 0.0
    %569 = vmatpush.msra.mxu0 0.0
    %570 = vmatpush.msra.mxu0 0.0
    %571 = vmatpush.msra.mxu0 0.0
    %572 = vmatpush.msra.mxu0 0.0
    %573 = vmatpush.msra.mxu0 0.0
    %574 = vmatpush.msra.mxu0 0.0
    %575 = vmatpush.msra.mxu0 %v136
    %576 = vmatpush.msra.mxu0 %v130
    %577 = vmatpush.msra.mxu0 %v129
    %578 = vmatmul.f32.gmra.mxu0 %v560
    %v579 = vpop.f32.mrf.mxu0
    %v580 = vadd.f32 0.0, %v579
    %581 = vdwg.mxu0
    %v583 = vrot.slane %v580, 2
    %v585 = vadd.f32 %v127, %v583
    %v586 = vxor.u32 %v585, 2147483648
    %v587 = vmul.f32 %v586, 1.442695
    %v588 = vpow.pop %v587
    %v589 = vadd.f32 %v588, 1.0
    %v590 = vrcp.pop %v589
    %v591 = vmul.f32 %v589, %v590
    %v592 = vsub.f32 1.0, %v591
    %v593 = vmul.f32 %v590, %v592
    %v594 = vadd.f32 %v590, %v593
    %vm595 = vweird.f32 %v589
    %vm596 = vweird.f32 %v590
    %vm597 = vmor %vm595, %vm596
    %v598 = vsel %vm597, %v590, %v594
    %v599 = vand.u32 2147483647, %v589
    %vm600 = vcmp.eq.f32.partialorder %v599, 8.507059e+37
    %v601 = vand.u32 %v589, 2147483648
    %v602 = vor.u32 1.1754944e-38, %v601
    %v603 = vsel %vm600, %v602, %v598
    %v604 = vmul.f32 1.0, %v603
    %v605 = vtanh.pop %v585
    %v607 = vrot.slane %v547, 7
    %v609 = vmul.f32 %v604, %v607
    %611 = vrot.lane.b32.xlu0 %v605, 88
    %v612 = vpop.permute.xlu0 %611
    %v614 = vmul.f32 %v604, %v612
    %616 = vrot.lane.b32.xlu0 %v614, 20
    %v617 = vpop.permute.xlu0 %616
    %v619 = vadd.f32 %v609, %v617
    %v620 = vtanh.pop %v619
    %622 = vrot.lane.b32.xlu0 %v620, 40
    %v623 = vpop.permute.xlu0 %622
    %v625 = vmul.f32 %v604, %v623
    %v627 = vrot.slane %v625, 6
    %v629 = vadd.f32 %v557, %v627
    %630 = vrot.lane.b32.xlu0 %v627, 68
    %v631 = vpop.permute.xlu0 %630
    %v632 = vsel %vm101, %v631, 0
    %634 = vmatpush.msra.mxu0 0.0
    %635 = vmatpush.msra.mxu0 0.0
    %636 = vmatpush.msra.mxu0 0.0
    %637 = vmatpush.msra.mxu0 0.0
    %638 = vmatpush.msra.mxu0 0.0
    %639 = vmatpush.msra.mxu0 0.0
    %640 = vmatpush.msra.mxu0 0.0
    %641 = vmatpush.msra.mxu0 0.0
    %642 = vmatpush.msra.mxu0 0.0
    %643 = vmatpush.msra.mxu0 0.0
    %644 = vmatpush.msra.mxu0 0.0
    %645 = vmatpush.msra.mxu0 0.0
    %646 = vmatpush.msra.mxu0 0.0
    %647 = vmatpush.msra.mxu0 %v136
    %648 = vmatpush.msra.mxu0 %v130
    %649 = vmatpush.msra.mxu0 %v129
    %650 = vmatmul.f32.gmra.mxu0 %v632
    %v651 = vpop.f32.mrf.mxu0
    %v652 = vadd.f32 0.0, %v651
    %653 = vdwg.mxu0
    %v655 = vrot.slane %v652, 1
    %v657 = vadd.f32 %v127, %v655
    %v658 = vxor.u32 %v657, 2147483648
    %v659 = vmul.f32 %v658, 1.442695
    %v660 = vpow.pop %v659
    %v661 = vadd.f32 %v660, 1.0
    %v662 = vrcp.pop %v661
    %v663 = vmul.f32 %v661, %v662
    %v664 = vsub.f32 1.0, %v663
    %v665 = vmul.f32 %v662, %v664
    %v666 = vadd.f32 %v662, %v665
    %vm667 = vweird.f32 %v661
    %vm668 = vweird.f32 %v662
    %vm669 = vmor %vm667, %vm668
    %v670 = vsel %vm669, %v662, %v666
    %v671 = vand.u32 2147483647, %v661
    %vm672 = vcmp.eq.f32.partialorder %v671, 8.507059e+37
    %v673 = vand.u32 %v661, 2147483648
    %v674 = vor.u32 1.1754944e-38, %v673
    %v675 = vsel %vm672, %v674, %v670
    %v676 = vmul.f32 1.0, %v675
    %v677 = vtanh.pop %v657
    %v679 = vrot.slane %v619, 7
    %v681 = vmul.f32 %v676, %v679
    %683 = vrot.lane.b32.xlu0 %v677, 88
    %v684 = vpop.permute.xlu0 %683
    %v686 = vmul.f32 %v676, %v684
    %688 = vrot.lane.b32.xlu0 %v686, 20
    %v689 = vpop.permute.xlu0 %688
    %v691 = vadd.f32 %v681, %v689
    %v692 = vtanh.pop %v691
    %694 = vrot.lane.b32.xlu0 %v692, 40
    %v695 = vpop.permute.xlu0 %694
    %v697 = vmul.f32 %v676, %v695
    %v699 = vrot.slane %v697, 7
    %v701 = vadd.f32 %v629, %v699
    %v702 = vld [vmem:[#allocation5] sm:$0x1]
    %v703 = vld [vmem:[#allocation5 + $0x1] sm:$0x1]
    %v704 = vld [vmem:[#allocation2 + $0x48] sm:$0xff]
    %v705 = vld [vmem:[#allocation2 + $0x50] sm:$0xff]
    %v706 = vld [vmem:[#allocation2 + $0x58] sm:$0xf]
    %v707 = vld [vmem:[#allocation2 + $0x60] sm:$0xff]
    %v708 = vld [vmem:[#allocation2 + $0x68] sm:$0xff]
    %v709 = vld [vmem:[#allocation2 + $0x70] sm:$0xf]
    %v711 = vsel %vm101, %v702, 0
    %v714 = vsel %vm105, %v709, 0
    %716 = vmatpush.msra.mxu0 0.0
    %717 = vmatpush.msra.mxu0 0.0
    %718 = vmatpush.msra.mxu0 0.0
    %719 = vmatpush.msra.mxu0 0.0
    %720 = vmatpush.msra.mxu0 0.0
    %721 = vmatpush.msra.mxu0 0.0
    %722 = vmatpush.msra.mxu0 0.0
    %723 = vmatpush.msra.mxu0 0.0
    %724 = vmatpush.msra.mxu0 0.0
    %725 = vmatpush.msra.mxu0 0.0
    %726 = vmatpush.msra.mxu0 0.0
    %727 = vmatpush.msra.mxu0 0.0
    %728 = vmatpush.msra.mxu0 0.0
    %729 = vmatpush.msra.mxu0 %v714
    %730 = vmatpush.msra.mxu0 %v708
    %731 = vmatpush.msra.mxu0 %v707
    %732 = vmatmul.f32.gmra.mxu0 %v711
    %v733 = vpop.f32.mrf.mxu0
    %v734 = vadd.f32 0.0, %v733
    %735 = vdwg.mxu0
    %737 = vrot.lane.b32.xlu0 %v701, 68
    %v738 = vpop.permute.xlu0 %737
    %v739 = vsel %vm101, %v738, 0
    %v742 = vsel %vm105, %v706, 0
    %744 = vmatpush.msra.mxu0 0.0
    %745 = vmatpush.msra.mxu0 0.0
    %746 = vmatpush.msra.mxu0 0.0
    %747 = vmatpush.msra.mxu0 0.0
    %748 = vmatpush.msra.mxu0 0.0
    %749 = vmatpush.msra.mxu0 0.0
    %750 = vmatpush.msra.mxu0 0.0
    %751 = vmatpush.msra.mxu0 0.0
    %752 = vmatpush.msra.mxu0 0.0
    %753 = vmatpush.msra.mxu0 0.0
    %754 = vmatpush.msra.mxu0 0.0
    %755 = vmatpush.msra.mxu0 0.0
    %756 = vmatpush.msra.mxu0 0.0
    %757 = vmatpush.msra.mxu0 %v742
    %758 = vmatpush.msra.mxu0 %v705
    %759 = vmatpush.msra.mxu0 %v704
    %760 = vmatmul.f32.gmra.mxu0 %v739
    %v761 = vpop.f32.mrf.mxu0
    %v762 = vadd.f32 %v734, %v761
    %763 = vdwg.mxu0
    %v764 = vld [vmem:[#allocation2 + $0x78] sm:$0x1]
    %v765 = vadd.f32 %v762, %v764
    %v766 = vxor.u32 %v765, 2147483648
    %v767 = vmul.f32 %v766, 1.442695
    %v768 = vpow.pop %v767
    %v769 = vadd.f32 %v768, 1.0
    %v770 = vrcp.pop %v769
    %v771 = vmul.f32 %v769, %v770
    %v772 = vsub.f32 1.0, %v771
    %v773 = vmul.f32 %v770, %v772
    %v774 = vadd.f32 %v770, %v773
    %vm775 = vweird.f32 %v769
    %vm776 = vweird.f32 %v770
    %vm777 = vmor %vm775, %vm776
    %v778 = vsel %vm777, %v770, %v774
    %v779 = vand.u32 2147483647, %v769
    %vm780 = vcmp.eq.f32.partialorder %v779, 8.507059e+37
    %v781 = vand.u32 %v769, 2147483648
    %v782 = vor.u32 1.1754944e-38, %v781
    %v783 = vsel %vm780, %v782, %v778
    %v784 = vmul.f32 1.0, %v783
    %v785 = vtanh.pop %v765
    %787 = vrot.lane.b32.xlu0 %v703, 20
    %v788 = vpop.permute.xlu0 %787
    %v790 = vmul.f32 %v784, %v788
    %792 = vrot.lane.b32.xlu0 %v785, 88
    %v793 = vpop.permute.xlu0 %792
    %v795 = vmul.f32 %v784, %v793
    %797 = vrot.lane.b32.xlu0 %v795, 20
    %v798 = vpop.permute.xlu0 %797
    %v800 = vadd.f32 %v790, %v798
    %v801 = vtanh.pop %v800
    %803 = vrot.lane.b32.xlu0 %v801, 40
    %v804 = vpop.permute.xlu0 %803
    %v806 = vmul.f32 %v784, %v804
    %v807 = vld [vmem:[#allocation2 + $0x80] sm:$0xff]
    %v808 = vld [vmem:[#allocation2 + $0x88] sm:$0xff]
    %v809 = vld [vmem:[#allocation2 + $0x90] sm:$0xf]
    %v810 = vld [vmem:[#allocation2 + $0x98] sm:$0xff]
    %v811 = vld [vmem:[#allocation2 + $0xa0] sm:$0xff]
    %v812 = vld [vmem:[#allocation2 + $0xa8] sm:$0xf]
    %814 = vrot.lane.b32.xlu0 %v806, 68
    %v815 = vpop.permute.xlu0 %814
    %v816 = vsel %vm101, %v815, 0
    %v819 = vsel %vm105, %v812, 0
    %821 = vmatpush.msra.mxu0 0.0
    %822 = vmatpush.msra.mxu0 0.0
    %823 = vmatpush.msra.mxu0 0.0
    %824 = vmatpush.msra.mxu0 0.0
    %825 = vmatpush.msra.mxu0 0.0
    %826 = vmatpush.msra.mxu0 0.0
    %827 = vmatpush.msra.mxu0 0.0
    %828 = vmatpush.msra.mxu0 0.0
    %829 = vmatpush.msra.mxu0 0.0
    %830 = vmatpush.msra.mxu0 0.0
    %831 = vmatpush.msra.mxu0 0.0
    %832 = vmatpush.msra.mxu0 0.0
    %833 = vmatpush.msra.mxu0 0.0
    %834 = vmatpush.msra.mxu0 %v819
    %835 = vmatpush.msra.mxu0 %v811
    %836 = vmatpush.msra.mxu0 %v810
    %837 = vmatmul.f32.gmra.mxu0 %v816
    %v838 = vpop.f32.mrf.mxu0
    %v839 = vadd.f32 0.0, %v838
    %840 = vdwg.mxu0
    %v842 = vsel %vm105, %v809, 0
    %844 = vmatpush.msra.mxu0 0.0
    %845 = vmatpush.msra.mxu0 0.0
    %846 = vmatpush.msra.mxu0 0.0
    %847 = vmatpush.msra.mxu0 0.0
    %848 = vmatpush.msra.mxu0 0.0
    %849 = vmatpush.msra.mxu0 0.0
    %850 = vmatpush.msra.mxu0 0.0
    %851 = vmatpush.msra.mxu0 0.0
    %852 = vmatpush.msra.mxu0 0.0
    %853 = vmatpush.msra.mxu0 0.0
    %854 = vmatpush.msra.mxu0 0.0
    %855 = vmatpush.msra.mxu0 0.0
    %856 = vmatpush.msra.mxu0 0.0
    %857 = vmatpush.msra.mxu0 %v842
    %858 = vmatpush.msra.mxu0 %v808
    %859 = vmatpush.msra.mxu0 %v807
    %860 = vmatmul.f32.gmra.mxu0 %v739
    %v861 = vpop.f32.mrf.mxu0
    %v862 = vadd.f32 %v839, %v861
    %863 = vdwg.mxu0
    %v864 = vld [vmem:[#allocation2 + $0xb0] sm:$0x1]
    %v865 = vadd.f32 %v862, %v864
    %v866 = vmax.f32 %v865, 0.0
    %v867 = vld [vmem:[#allocation2 + $0xb8] sm:$0xff]
    %v868 = vld [vmem:[#allocation2 + $0xc0] sm:$0xff]
    %v869 = vld [vmem:[#allocation2 + $0xc8] sm:$0xf]
    %v870 = vld [vmem:[#allocation2 + $0xd0] sm:$0x1]
    %v872 = vsel %vm101, %v866, 0
    %v875 = vsel %vm105, %v869, 0
    %877 = vmatpush.msra.mxu0 0.0
    %878 = vmatpush.msra.mxu0 0.0
    %879 = vmatpush.msra.mxu0 0.0
    %880 = vmatpush.msra.mxu0 0.0
    %881 = vmatpush.msra.mxu0 0.0
    %882 = vmatpush.msra.mxu0 0.0
    %883 = vmatpush.msra.mxu0 0.0
    %884 = vmatpush.msra.mxu0 0.0
    %885 = vmatpush.msra.mxu0 0.0
    %886 = vmatpush.msra.mxu0 0.0
    %887 = vmatpush.msra.mxu0 0.0
    %888 = vmatpush.msra.mxu0 0.0
    %889 = vmatpush.msra.mxu0 0.0
    %890 = vmatpush.msra.mxu0 %v875
    %891 = vmatpush.msra.mxu0 %v868
    %892 = vmatpush.msra.mxu0 %v867
    %893 = vmatmul.f32.gmra.mxu0 %v872
    %v894 = vpop.f32.mrf.mxu0
    %v895 = vadd.f32 %v870, %v894
    %896 = vdwg.mxu0
    %vm897 = vcmask 24576
    %898 = vst.msk [vmem:[#allocation7] sm:$0x1] %vm897, %v895
    %v900 = vrot.slane %v800, 7
    %901 = vrot.lane.b32.xlu0 %v900, 40
    %v902 = vpop.permute.xlu0 %901
    %vm904 = vcmask 1040384
    %v905 = vsel %vm904, %v806, %v902
    %907 = vrot.lane.b32.xlu0 %v905, 68
    %v908 = vpop.permute.xlu0 %907
    %vm910 = vcmask 156672
    %911 = vst.msk [vmem:[#allocation8] sm:$0x3] %vm910, %v908
    // Predicated region
    $region22: #{tpu_custom_call.1} parent=1 // pred_check
      _
    $region23: #{tpu_custom_call.1} parent=1 // pred_check_branch
      %913 = sbr.rel (0) target = $region25
    $region24: #{tpu_custom_call.1} parent=1 // pred_region
      %915 = vsyncadd [#allocation4], 0
      %s917 = sshll.u32 [#allocation7], 4
      %s918 = int_to_ptr.vmem [resolvable:$true] %s917
      %s919 = sshll.u32 %s3, 4
      %s920 = int_to_ptr.hbm [resolvable:$true] %s919
      %922 = dma.vmem_to_hbm [thread:$0]  %s918, 16, %s920, [#allocation4]
    $region25: #{tpu_custom_call.1} parent=1 // pred_fallthru
      _
    // Predicated region
    $region26: #{tpu_custom_call.1} parent=1 // pred_check
      _
    $region27: #{tpu_custom_call.1} parent=1 // pred_check_branch
      %924 = sbr.rel (0) target = $region29
    $region28: #{tpu_custom_call.1} parent=1 // pred_region
      %926 = vsyncadd [#allocation9], 0
      %s928 = sshll.u32 [#allocation8], 4
      %s929 = int_to_ptr.vmem [resolvable:$true] %s928
      %s930 = sshll.u32 %s4, 4
      %s931 = int_to_ptr.hbm [resolvable:$true] %s930
      %933 = dma.vmem_to_hbm [thread:$0]  %s929, 32, %s931, [#allocation9]
    $region29: #{tpu_custom_call.1} parent=1 // pred_fallthru
      _
    // Predicated region
    $region30: #{tpu_custom_call.1} parent=1 // pred_check
      _
    $region31: #{tpu_custom_call.1} parent=1 // pred_check_branch
      %935 = sbr.rel (0) target = $region33
    $region32: #{tpu_custom_call.1} parent=1 // pred_region
      %937 = dma.done [#allocation4], 16
    $region33: #{tpu_custom_call.1} parent=1 // pred_fallthru
      _
    // Predicated region
    $region34: #{tpu_custom_call.1} parent=1 // pred_check
      _
    $region35: #{tpu_custom_call.1} parent=1 // pred_check_branch
      %939 = sbr.rel (0) target = $region37
    $region36: #{tpu_custom_call.1} parent=1 // pred_region
      %941 = dma.done [#allocation9], 32
    $region37: #{tpu_custom_call.1} parent=1 // pred_fallthru
      _
    %942 = vsyncpa [#allocation3], 1
    %943 = vsyncpa [#allocation6], 1
    %944 = vsyncpa [#allocation4], 1
    %945 = vsyncpa [#allocation9], 1

</llo_original>
